<compile_context>
chip_gen: v5e
topology: v5e:2x2
jax: 0.10.0
libtpu: 0.0.40
codegen_flags: <defaults>
</compile_context>

<pallas_src>
import functools

import jax
import jax.numpy as jnp
from jax.experimental import pallas as pl
from jax.experimental.pallas import tpu as pltpu


def _simclr_kernel(y_ref, wb_ref, bb_ref, w1_ref, b1_ref, w2_ref, b2_ref,
                   loss_ref, *, batch, inv_temp):
    """Fused SimCLR forward: encoder(both views) -> normalize -> infoNCE."""
    bf16 = jnp.bfloat16

    # --- fused encoder over the stacked (2B_pad, Din_pad) views -------------
    # bf16 MXU inputs, f32 accumulation; bias / ReLU in f32 on the VPU.
    h = jnp.dot(y_ref[...], wb_ref[...],
                preferred_element_type=jnp.float32) + bb_ref[...]
    # projector: Linear -> ReLU -> Linear
    p = jnp.dot(h.astype(bf16), w1_ref[...],
                preferred_element_type=jnp.float32) + b1_ref[...]
    p = jnp.maximum(p, 0.0)
    z = jnp.dot(p.astype(bf16), w2_ref[...],
                preferred_element_type=jnp.float32) + b2_ref[...]
    # torch.squeeze(z, dim=1) is a no-op for (B, proj_dim) with proj_dim > 1.

    # --- L2-normalize in f32 (matches torch F.normalize(dim=1, eps=1e-12)) --
    sumsq = jnp.sum(z * z, axis=1, keepdims=True)
    zn = z * jax.lax.rsqrt(jnp.maximum(sumsq, 1e-24))

    # Fold 1/temperature into z1 before the matmul (O(B*P) instead of O(B^2)).
    z1s = zn[:batch] * inv_temp
    z2n = zn[batch:2 * batch]

    # --- logits = (z1n @ z2n.T) / temperature, without an XLU transpose ------
    logits = jax.lax.dot_general(
        z1s, z2n, (((1,), (1,)), ((), ())),
        preferred_element_type=jnp.float32)

    # diag(logits) directly as a row-wise dot (no iota / select / row reduce).
    diag = jnp.sum(z1s * z2n, axis=1, keepdims=True)

    # --- shared-exp cross entropy -------------------------------------------
    # Rows are unit-norm, so logits <= inv_temp: shifting by that constant is
    # exact and overflow-safe, and ONE exp serves both CE directions.
    e = jnp.exp(logits - inv_temp)
    # Row-wise CE (infoNCE(z1, z2)) and column-wise CE (infoNCE(z2, z1),
    # i.e. CE on logits.T) reduce the same array along axis 1 / axis 0.
    lse_r = inv_temp + jnp.log(jnp.sum(e, axis=1, keepdims=True))
    lse_c = inv_temp + jnp.log(jnp.sum(e, axis=0, keepdims=True))

    # infoNCE(z1, z2)/2 + infoNCE(z2, z1)/2
    loss = 0.5 * jnp.mean(lse_r) + 0.5 * jnp.mean(lse_c) - jnp.mean(diag)
    loss_ref[0, 0] = loss


def _round_up(x, m):
    return ((x + m - 1) // m) * m


def simclr_loss(y1, y2, params, temperature=0.2):
    wb, bb, w1, b1, w2, b2 = params
    B, d_in = y1.shape
    out_dim, hid_dim, proj_dim = wb.shape[1], w1.shape[1], w2.shape[1]

    # Per-layer lane padding (128-aligned K/N) — NOT a single global square
    # P x P, so a large D_in does not inflate the projector matmuls.
    dp = _round_up(d_in, 128)
    op = _round_up(out_dim, 128)
    hp = _round_up(hid_dim, 128)
    pp = _round_up(proj_dim, 128)
    rows = _round_up(2 * B, 16)          # bf16 sublane multiple

    def pad2(a, r, c):
        return jnp.pad(a, ((0, r - a.shape[0]), (0, c - a.shape[1])))

    bf16 = jnp.bfloat16
    # Fuse both views into one stacked operand; zero padding is transparent
    # (zero weight rows/cols, zero biases); padded ROWS are excluded from the
    # loss inside the kernel via the static `batch` slices.
    y = pad2(jnp.concatenate([y1, y2], axis=0), rows, dp).astype(bf16)
    wb_p = pad2(wb, dp, op).astype(bf16)
    bb_p = pad2(bb, 1, op)
    w1_p = pad2(w1, op, hp).astype(bf16)
    b1_p = pad2(b1, 1, hp)
    w2_p = pad2(w2, hp, pp).astype(bf16)
    b2_p = pad2(b2, 1, pp)

    kernel = functools.partial(_simclr_kernel, batch=B,
                               inv_temp=1.0 / temperature)
    out = pl.pallas_call(
        kernel,
        out_shape=jax.ShapeDtypeStruct((1, 1), jnp.float32),
        in_specs=[pl.BlockSpec(memory_space=pltpu.MemorySpace.VMEM)] * 7,
        out_specs=pl.BlockSpec(memory_space=pltpu.MemorySpace.SMEM),
    )(y, wb_p, bb_p, w1_p, b1_p, w2_p, b2_p)
    return out[0, 0]


def _reference_loss(y1, y2, params, temperature=0.2):
    """Pure-JAX reference mirroring the kernel math (bf16 MXU inputs,
    f32 accumulation).  Relative to an all-f32 torch forward the bf16 matmul
    inputs introduce ~1e-2-level differences; everything else is identical."""
    wb, bb, w1, b1, w2, b2 = params
    bf16 = jnp.bfloat16

    def encode(y):
        h = jnp.dot(y.astype(bf16), wb.astype(bf16),
                    preferred_element_type=jnp.float32) + bb
        p = jnp.maximum(jnp.dot(h.astype(bf16), w1.astype(bf16),
                                preferred_element_type=jnp.float32) + b1, 0.0)
        return jnp.dot(p.astype(bf16), w2.astype(bf16),
                       preferred_element_type=jnp.float32) + b2

    def l2norm(z):
        # == F.normalize(dim=1, eps=1e-12)
        return z * jax.lax.rsqrt(
            jnp.maximum(jnp.sum(z * z, axis=1, keepdims=True), 1e-24))

    z1n, z2n = l2norm(encode(y1)), l2norm(encode(y2))
    logits = (z1n @ z2n.T) / temperature

    def ce(lg):
        lse = jax.scipy.special.logsumexp(lg, axis=1)
        return jnp.mean(lse - jnp.diag(lg))

    return 0.5 * ce(logits) + 0.5 * ce(logits.T)


if __name__ == "__main__":
    # Small, module-consistent shapes:
    # num_extra_chans = 0 -> input_size = (2*0+1)*121 = 121
    B, D_IN, OUT_DIM, PROJ_DIM = 8, 121, 128, 128

    key = jax.random.PRNGKey(0)
    k_y1, k_y2, k_wb, k_bb, k_w1, k_b1, k_w2, k_b2 = jax.random.split(key, 8)

    y1 = jax.random.normal(k_y1, (B, D_IN), dtype=jnp.float32)
    y2 = jax.random.normal(k_y2, (B, D_IN), dtype=jnp.float32)

    # Deterministic parameter init (synthetic weights, not a checkpoint).
    wb = jax.random.normal(k_wb, (D_IN, OUT_DIM), dtype=jnp.float32) * 0.05
    bb = jax.random.normal(k_bb, (1, OUT_DIM), dtype=jnp.float32) * 0.01
    w1 = jax.random.normal(k_w1, (OUT_DIM, PROJ_DIM), dtype=jnp.float32) * 0.1
    b1 = jax.random.normal(k_b1, (1, PROJ_DIM), dtype=jnp.float32) * 0.01
    w2 = jax.random.normal(k_w2, (PROJ_DIM, PROJ_DIM), dtype=jnp.float32) * 0.1
    b2 = jax.random.normal(k_b2, (1, PROJ_DIM), dtype=jnp.float32) * 0.01
    params = (wb, bb, w1, b1, w2, b2)

    loss = simclr_loss(y1, y2, params)
    loss = jax.block_until_ready(loss)

    ref = jax.block_until_ready(_reference_loss(y1, y2, params))
    assert jnp.isfinite(loss), "kernel produced non-finite loss"
    assert jnp.allclose(loss, ref, rtol=1e-4, atol=1e-4), (loss, ref)

    print("KERNEL_OK")
</pallas_src>

<mosaic_0001>
module attributes {stable_mosaic.version = 11 : i64} {
  func.func @_simclr_kernel(%arg0: memref<16x128xbf16, #tpu.memory_space<vmem>>, %arg1: memref<128x128xbf16, #tpu.memory_space<vmem>>, %arg2: memref<1x128xf32, #tpu.memory_space<vmem>>, %arg3: memref<128x128xbf16, #tpu.memory_space<vmem>>, %arg4: memref<1x128xf32, #tpu.memory_space<vmem>>, %arg5: memref<128x128xbf16, #tpu.memory_space<vmem>>, %arg6: memref<1x128xf32, #tpu.memory_space<vmem>>, %arg7: memref<1x1xf32, #tpu.memory_space<smem>>) attributes {dimension_semantics = [], scalar_prefetch = 0 : i64, scratch_operands = 0 : i64, tpu.core_type = #tpu.core_type<tc>} {
    %c0 = arith.constant 0 : index
    %c0_0 = arith.constant 0 : index
    %0 = vector.load %arg0[%c0, %c0_0] : memref<16x128xbf16, #tpu.memory_space<vmem>>, vector<16x128xbf16>
    %c0_1 = arith.constant 0 : index
    %c0_2 = arith.constant 0 : index
    %1 = vector.load %arg1[%c0_1, %c0_2] : memref<128x128xbf16, #tpu.memory_space<vmem>>, vector<128x128xbf16>
    %cst = arith.constant dense<0.000000e+00> : vector<16x128xf32>
    %2 = tpu.matmul %0, %1, %cst {dimension_numbers = #tpu.dot_dimension_numbers<[1], [0], [0], [1], [0, 0, 1, 1], [], []>} : vector<16x128xbf16>, vector<128x128xbf16>, vector<16x128xf32> -> vector<16x128xf32>
    %c0_3 = arith.constant 0 : index
    %c0_4 = arith.constant 0 : index
    %3 = vector.load %arg2[%c0_3, %c0_4] : memref<1x128xf32, #tpu.memory_space<vmem>>, vector<1x128xf32>
    %4 = vector.broadcast %3 : vector<1x128xf32> to vector<16x128xf32>
    %5 = arith.addf %2, %4 : vector<16x128xf32>
    %6 = arith.truncf %5 : vector<16x128xf32> to vector<16x128xbf16>
    %c0_5 = arith.constant 0 : index
    %c0_6 = arith.constant 0 : index
    %7 = vector.load %arg3[%c0_5, %c0_6] : memref<128x128xbf16, #tpu.memory_space<vmem>>, vector<128x128xbf16>
    %cst_7 = arith.constant dense<0.000000e+00> : vector<16x128xf32>
    %8 = tpu.matmul %6, %7, %cst_7 {dimension_numbers = #tpu.dot_dimension_numbers<[1], [0], [0], [1], [0, 0, 1, 1], [], []>} : vector<16x128xbf16>, vector<128x128xbf16>, vector<16x128xf32> -> vector<16x128xf32>
    %c0_8 = arith.constant 0 : index
    %c0_9 = arith.constant 0 : index
    %9 = vector.load %arg4[%c0_8, %c0_9] : memref<1x128xf32, #tpu.memory_space<vmem>>, vector<1x128xf32>
    %10 = vector.broadcast %9 : vector<1x128xf32> to vector<16x128xf32>
    %11 = arith.addf %8, %10 : vector<16x128xf32>
    %cst_10 = arith.constant 0.000000e+00 : f32
    %12 = vector.broadcast %cst_10 : f32 to vector<16x128xf32>
    %13 = arith.maximumf %11, %12 : vector<16x128xf32>
    %14 = arith.truncf %13 : vector<16x128xf32> to vector<16x128xbf16>
    %c0_11 = arith.constant 0 : index
    %c0_12 = arith.constant 0 : index
    %15 = vector.load %arg5[%c0_11, %c0_12] : memref<128x128xbf16, #tpu.memory_space<vmem>>, vector<128x128xbf16>
    %cst_13 = arith.constant dense<0.000000e+00> : vector<16x128xf32>
    %16 = tpu.matmul %14, %15, %cst_13 {dimension_numbers = #tpu.dot_dimension_numbers<[1], [0], [0], [1], [0, 0, 1, 1], [], []>} : vector<16x128xbf16>, vector<128x128xbf16>, vector<16x128xf32> -> vector<16x128xf32>
    %c0_14 = arith.constant 0 : index
    %c0_15 = arith.constant 0 : index
    %17 = vector.load %arg6[%c0_14, %c0_15] : memref<1x128xf32, #tpu.memory_space<vmem>>, vector<1x128xf32>
    %18 = vector.broadcast %17 : vector<1x128xf32> to vector<16x128xf32>
    %19 = arith.addf %16, %18 : vector<16x128xf32>
    %20 = arith.mulf %19, %19 : vector<16x128xf32>
    %cst_16 = arith.constant dense<0.000000e+00> : vector<16xf32>
    %21 = vector.multi_reduction <add>, %20, %cst_16 [1] : vector<16x128xf32> to vector<16xf32>
    %22 = vector.shape_cast %21 : vector<16xf32> to vector<16x1xf32>
    %cst_17 = arith.constant 1.000000e-24 : f32
    %23 = vector.broadcast %cst_17 : f32 to vector<16x1xf32>
    %24 = arith.maximumf %22, %23 : vector<16x1xf32>
    %25 = math.rsqrt %24 : vector<16x1xf32>
    %26 = vector.broadcast %25 : vector<16x1xf32> to vector<16x128xf32>
    %27 = arith.mulf %19, %26 : vector<16x128xf32>
    %28 = vector.extract_strided_slice %27 {offsets = [0, 0], sizes = [8, 128], strides = [1, 1]} : vector<16x128xf32> to vector<8x128xf32>
    %cst_18 = arith.constant 5.000000e+00 : f32
    %29 = vector.broadcast %cst_18 : f32 to vector<8x128xf32>
    %30 = arith.mulf %28, %29 : vector<8x128xf32>
    %31 = vector.extract_strided_slice %27 {offsets = [8, 0], sizes = [8, 128], strides = [1, 1]} : vector<16x128xf32> to vector<8x128xf32>
    %cst_19 = arith.constant dense<0.000000e+00> : vector<8x8xf32>
    %32 = tpu.matmul %30, %31, %cst_19 {dimension_numbers = #tpu.dot_dimension_numbers<[1], [1], [0], [0], [0, 0, 1, 0], [], []>} : vector<8x128xf32>, vector<8x128xf32>, vector<8x8xf32> -> vector<8x8xf32>
    %33 = arith.mulf %30, %31 : vector<8x128xf32>
    %cst_20 = arith.constant dense<0.000000e+00> : vector<8xf32>
    %34 = vector.multi_reduction <add>, %33, %cst_20 [1] : vector<8x128xf32> to vector<8xf32>
    %35 = vector.shape_cast %34 : vector<8xf32> to vector<8x1xf32>
    %cst_21 = arith.constant 5.000000e+00 : f32
    %36 = vector.broadcast %cst_21 : f32 to vector<8x8xf32>
    %37 = arith.subf %32, %36 : vector<8x8xf32>
    %38 = math.exp %37 : vector<8x8xf32>
    %cst_22 = arith.constant dense<0.000000e+00> : vector<8xf32>
    %39 = vector.multi_reduction <add>, %38, %cst_22 [1] : vector<8x8xf32> to vector<8xf32>
    %40 = vector.shape_cast %39 : vector<8xf32> to vector<8x1xf32>
    %41 = math.log %40 : vector<8x1xf32>
    %cst_23 = arith.constant 5.000000e+00 : f32
    %42 = vector.broadcast %cst_23 : f32 to vector<8x1xf32>
    %43 = arith.addf %42, %41 : vector<8x1xf32>
    %cst_24 = arith.constant dense<0.000000e+00> : vector<8xf32>
    %44 = vector.multi_reduction <add>, %38, %cst_24 [0] : vector<8x8xf32> to vector<8xf32>
    %45 = vector.shape_cast %44 : vector<8xf32> to vector<1x8xf32>
    %46 = math.log %45 : vector<1x8xf32>
    %cst_25 = arith.constant 5.000000e+00 : f32
    %47 = vector.broadcast %cst_25 : f32 to vector<1x8xf32>
    %48 = arith.addf %47, %46 : vector<1x8xf32>
    %49 = vector.shape_cast %43 : vector<8x1xf32> to vector<1x8x1xf32>
    %cst_26 = arith.constant dense<0.000000e+00> : vector<1xf32>
    %50 = vector.multi_reduction <add>, %49, %cst_26 [1, 2] : vector<1x8x1xf32> to vector<1xf32>
    %51 = vector.shape_cast %50 : vector<1xf32> to vector<1x1x1xf32>
    %52 = vector.extract %51[0, 0, 0] : f32 from vector<1x1x1xf32>
    %cst_27 = arith.constant 8.000000e+00 : f32
    %53 = arith.divf %52, %cst_27 : f32
    %cst_28 = arith.constant 5.000000e-01 : f32
    %54 = arith.mulf %cst_28, %53 : f32
    %55 = vector.shape_cast %48 : vector<1x8xf32> to vector<1x1x8xf32>
    %cst_29 = arith.constant dense<0.000000e+00> : vector<1xf32>
    %56 = vector.multi_reduction <add>, %55, %cst_29 [1, 2] : vector<1x1x8xf32> to vector<1xf32>
    %57 = vector.shape_cast %56 : vector<1xf32> to vector<1x1x1xf32>
    %58 = vector.extract %57[0, 0, 0] : f32 from vector<1x1x1xf32>
    %cst_30 = arith.constant 8.000000e+00 : f32
    %59 = arith.divf %58, %cst_30 : f32
    %cst_31 = arith.constant 5.000000e-01 : f32
    %60 = arith.mulf %cst_31, %59 : f32
    %61 = arith.addf %54, %60 : f32
    %62 = vector.shape_cast %35 : vector<8x1xf32> to vector<1x8x1xf32>
    %cst_32 = arith.constant dense<0.000000e+00> : vector<1xf32>
    %63 = vector.multi_reduction <add>, %62, %cst_32 [1, 2] : vector<1x8x1xf32> to vector<1xf32>
    %64 = vector.shape_cast %63 : vector<1xf32> to vector<1x1x1xf32>
    %65 = vector.extract %64[0, 0, 0] : f32 from vector<1x1x1xf32>
    %cst_33 = arith.constant 8.000000e+00 : f32
    %66 = arith.divf %65, %cst_33 : f32
    %67 = arith.subf %61, %66 : f32
    %c0_34 = arith.constant 0 : index
    %c0_35 = arith.constant 0 : index
    %68 = memref.load %arg7[%c0_34, %c0_35] : memref<1x1xf32, #tpu.memory_space<smem>>
    memref.store %67, %arg7[%c0_34, %c0_35] : memref<1x1xf32, #tpu.memory_space<smem>>
    return
  }
}

</mosaic_0001>

<llo_original>
// kernel: tpu_custom_call.1
$region0: #{tpu_custom_call.1}
  #allocation0 [shape = 'u32[]', space=smem, size = 0x4, offset = 0x4, fixed_abs, tag = 'smem constant byte address 0x4 - core index']
  #allocation1 [shape = 'u32[72,128]{1,0:T(1,128)}', space=vmem, size = 0x9000, scoped, tag = 'internal scratch']
  %s0 = inlined_call_operand.hbm [shape: bf16[16,128], index: 0, kind: input, shape index: {}]
  %s1 = inlined_call_operand.hbm [shape: bf16[128,128], index: 1, kind: input, shape index: {}]
  %s2 = inlined_call_operand.vmem [shape: f32[1,128], index: 2, kind: input, shape index: {}]
  %s3 = inlined_call_operand.hbm [shape: bf16[128,128], index: 3, kind: input, shape index: {}]
  %s4 = inlined_call_operand.vmem [shape: f32[1,128], index: 4, kind: input, shape index: {}]
  %s5 = inlined_call_operand.hbm [shape: bf16[128,128], index: 5, kind: input, shape index: {}]
  %s6 = inlined_call_operand.vmem [shape: f32[1,128], index: 6, kind: input, shape index: {}]
  %s7 = inlined_call_operand.hbm [shape: f32[1,1], index: 7, kind: output, shape index: {}]
  %s8 = sld [smem:[#allocation0]]
  $region54: #{tpu_custom_call.1} parent=0
    _
  %s10 = ssub.s32 1, %s8
  %s11 = scalar_select 0, %s10, %s8
  $region1: #{tpu_custom_call.1} parent=0
    #allocation2 [shape = 'u8[4096]{0}', space=vmem, size = 0x1000, scoped, tag = 'input window, operand 0, single buffered']
    #allocation3 [shape = 's32[1]{0}', space=sflag, size = 0x4, scoped, tag = 'scoped memory for tpu_custom_call.1']
    #allocation4 [shape = 's32[1]{0}', space=sflag, size = 0x4, scoped, tag = 'scoped memory for tpu_custom_call.1']
    #allocation5 [shape = 'u8[32768]{0}', space=vmem, size = 0x8000, scoped, tag = 'input window, operand 1, single buffered']
    #allocation6 [shape = 's32[1]{0}', space=sflag, size = 0x4, scoped, tag = 'scoped memory for tpu_custom_call.1']
    #allocation7 [shape = 'u8[32768]{0}', space=vmem, size = 0x8000, scoped, tag = 'input window, operand 3, single buffered']
    #allocation8 [shape = 'u8[32768]{0}', space=vmem, size = 0x8000, scoped, tag = 'input window, operand 5, single buffered']
    #allocation9 [shape = 's32[1]{0}', space=sflag, size = 0x4, scoped, tag = 'scoped memory for tpu_custom_call.1']
    #allocation10 [shape = 'u8[512]{0}', space=smem, size = 0x200, scoped, tag = 'output window, operand 0, single buffered']
    %12 = vsyncpa [#allocation3], 0
    %13 = vsyncpa [#allocation6], 0
    %14 = vsyncpa [#allocation9], 0
    %15 = vsyncpa [#allocation4], 0
    // Predicated region
    $region2: #{tpu_custom_call.1} parent=1 // pred_check
      _
    $region3: #{tpu_custom_call.1} parent=1 // pred_check_branch
      %17 = sbr.rel (0) target = $region5
    $region4: #{tpu_custom_call.1} parent=1 // pred_region
      %19 = vsyncadd [#allocation3], 0
      %s20 = sshll.u32 %s0, 4
      %s21 = int_to_ptr.hbm [resolvable:$true] %s20
      %s22 = sshll.u32 [#allocation2], 4
      %s23 = int_to_ptr.vmem [resolvable:$true] %s22
      %28 = dma.hbm_to_vmem [thread:$0]  %s21, 128, %s23, [#allocation3], 64, 64, 4
    $region5: #{tpu_custom_call.1} parent=1 // pred_fallthru
      _
    // Predicated region
    $region6: #{tpu_custom_call.1} parent=1 // pred_check
      _
    $region7: #{tpu_custom_call.1} parent=1 // pred_check_branch
      %30 = sbr.rel (0) target = $region9
    $region8: #{tpu_custom_call.1} parent=1 // pred_region
      %32 = vsyncadd [#allocation6], 0
      %s33 = sshll.u32 %s1, 4
      %s34 = int_to_ptr.hbm [resolvable:$true] %s33
      %s35 = sshll.u32 [#allocation5], 4
      %s36 = int_to_ptr.vmem [resolvable:$true] %s35
      %41 = dma.hbm_to_vmem [thread:$0]  %s34, 1024, %s36, [#allocation6], 64, 64, 4
    $region9: #{tpu_custom_call.1} parent=1 // pred_fallthru
      _
    // Predicated region
    $region10: #{tpu_custom_call.1} parent=1 // pred_check
      _
    $region11: #{tpu_custom_call.1} parent=1 // pred_check_branch
      %43 = sbr.rel (0) target = $region13
    $region12: #{tpu_custom_call.1} parent=1 // pred_region
      _
    $region13: #{tpu_custom_call.1} parent=1 // pred_fallthru
      _
    // Predicated region
    $region14: #{tpu_custom_call.1} parent=1 // pred_check
      _
    $region15: #{tpu_custom_call.1} parent=1 // pred_check_branch
      %45 = sbr.rel (0) target = $region17
    $region16: #{tpu_custom_call.1} parent=1 // pred_region
      %47 = vsyncadd [#allocation6], 0
      %s48 = sshll.u32 %s3, 4
      %s49 = int_to_ptr.hbm [resolvable:$true] %s48
      %s50 = sshll.u32 [#allocation7], 4
      %s51 = int_to_ptr.vmem [resolvable:$true] %s50
      %56 = dma.hbm_to_vmem [thread:$0]  %s49, 1024, %s51, [#allocation6], 64, 64, 4
    $region17: #{tpu_custom_call.1} parent=1 // pred_fallthru
      _
    // Predicated region
    $region18: #{tpu_custom_call.1} parent=1 // pred_check
      _
    $region19: #{tpu_custom_call.1} parent=1 // pred_check_branch
      %58 = sbr.rel (0) target = $region21
    $region20: #{tpu_custom_call.1} parent=1 // pred_region
      _
    $region21: #{tpu_custom_call.1} parent=1 // pred_fallthru
      _
    // Predicated region
    $region22: #{tpu_custom_call.1} parent=1 // pred_check
      _
    $region23: #{tpu_custom_call.1} parent=1 // pred_check_branch
      %60 = sbr.rel (0) target = $region25
    $region24: #{tpu_custom_call.1} parent=1 // pred_region
      %62 = vsyncadd [#allocation9], 0
      %s63 = sshll.u32 %s5, 4
      %s64 = int_to_ptr.hbm [resolvable:$true] %s63
      %s65 = sshll.u32 [#allocation8], 4
      %s66 = int_to_ptr.vmem [resolvable:$true] %s65
      %71 = dma.hbm_to_vmem [thread:$0]  %s64, 1024, %s66, [#allocation9], 64, 64, 4
    $region25: #{tpu_custom_call.1} parent=1 // pred_fallthru
      _
    // Predicated region
    $region26: #{tpu_custom_call.1} parent=1 // pred_check
      _
    $region27: #{tpu_custom_call.1} parent=1 // pred_check_branch
      %73 = sbr.rel (0) target = $region29
    $region28: #{tpu_custom_call.1} parent=1 // pred_region
      _
    $region29: #{tpu_custom_call.1} parent=1 // pred_fallthru
      _
    // Predicated region
    $region30: #{tpu_custom_call.1} parent=1 // pred_check
      _
    $region31: #{tpu_custom_call.1} parent=1 // pred_check_branch
      %75 = sbr.rel (0) target = $region33
    $region32: #{tpu_custom_call.1} parent=1 // pred_region
      %77 = dma.done [#allocation3], 128
    $region33: #{tpu_custom_call.1} parent=1 // pred_fallthru
      _
    // Predicated region
    $region34: #{tpu_custom_call.1} parent=1 // pred_check
      _
    $region35: #{tpu_custom_call.1} parent=1 // pred_check_branch
      %79 = sbr.rel (0) target = $region37
    $region36: #{tpu_custom_call.1} parent=1 // pred_region
      %81 = dma.done [#allocation6], 1024
    $region37: #{tpu_custom_call.1} parent=1 // pred_fallthru
      _
    // Predicated region
    $region38: #{tpu_custom_call.1} parent=1 // pred_check
      _
    $region39: #{tpu_custom_call.1} parent=1 // pred_check_branch
      %83 = sbr.rel (0) target = $region41
    $region40: #{tpu_custom_call.1} parent=1 // pred_region
      %85 = dma.done [#allocation6], 1024
    $region41: #{tpu_custom_call.1} parent=1 // pred_fallthru
      _
    // Predicated region
    $region42: #{tpu_custom_call.1} parent=1 // pred_check
      _
    $region43: #{tpu_custom_call.1} parent=1 // pred_check_branch
      %87 = sbr.rel (0) target = $region45
    $region44: #{tpu_custom_call.1} parent=1 // pred_region
      %89 = dma.done [#allocation9], 1024
    $region45: #{tpu_custom_call.1} parent=1 // pred_fallthru
      _
    %v90 = vld [vmem:[#allocation2] sm:$0xf]
    %v91 = vld [vmem:[#allocation2 + $0x4] sm:$0xf]
    %v92 = vld [vmem:[#allocation5] sm:$0xf]
    %v93 = vld [vmem:[#allocation5 + $0x4] sm:$0xf]
    %v94 = vld [vmem:[#allocation5 + $0x8] sm:$0xf]
    %v95 = vld [vmem:[#allocation5 + $0xc] sm:$0xf]
    %v96 = vld [vmem:[#allocation5 + $0x10] sm:$0xf]
    %v97 = vld [vmem:[#allocation5 + $0x14] sm:$0xf]
    %v98 = vld [vmem:[#allocation5 + $0x18] sm:$0xf]
    %v99 = vld [vmem:[#allocation5 + $0x1c] sm:$0xf]
    %v100 = vld [vmem:[#allocation5 + $0x20] sm:$0xf]
    %v101 = vld [vmem:[#allocation5 + $0x24] sm:$0xf]
    %v102 = vld [vmem:[#allocation5 + $0x28] sm:$0xf]
    %v103 = vld [vmem:[#allocation5 + $0x2c] sm:$0xf]
    %v104 = vld [vmem:[#allocation5 + $0x30] sm:$0xf]
    %v105 = vld [vmem:[#allocation5 + $0x34] sm:$0xf]
    %v106 = vld [vmem:[#allocation5 + $0x38] sm:$0xf]
    %v107 = vld [vmem:[#allocation5 + $0x3c] sm:$0xf]
    %v108 = vld [vmem:[%s2] sm:$0x1]
    %v110 = vperm.slane %v108, 0
    %v114 = vunpack.c.l.b16 %v90
    %v115 = vunpack.c.l.b16 %v91
    %v116 = vpack.c.b16 %v115, %v114
    %v134 = vunpack.c.l.b16 %v92
    %v135 = vunpack.c.l.b16 %v93
    %v136 = vunpack.c.l.b16 %v94
    %v137 = vunpack.c.l.b16 %v95
    %v138 = vunpack.c.l.b16 %v96
    %v139 = vunpack.c.l.b16 %v97
    %v140 = vunpack.c.l.b16 %v98
    %v141 = vunpack.c.l.b16 %v99
    %v142 = vunpack.c.l.b16 %v100
    %v143 = vunpack.c.l.b16 %v101
    %v144 = vunpack.c.l.b16 %v102
    %v145 = vunpack.c.l.b16 %v103
    %v146 = vunpack.c.l.b16 %v104
    %v147 = vunpack.c.l.b16 %v105
    %v148 = vunpack.c.l.b16 %v106
    %v149 = vunpack.c.l.b16 %v107
    %v150 = vpack.c.b16 %v135, %v134
    %v151 = vpack.c.b16 %v137, %v136
    %v152 = vpack.c.b16 %v139, %v138
    %v153 = vpack.c.b16 %v141, %v140
    %v154 = vpack.c.b16 %v143, %v142
    %v155 = vpack.c.b16 %v145, %v144
    %v156 = vpack.c.b16 %v147, %v146
    %v157 = vpack.c.b16 %v149, %v148
    %166 = vmatpush.bf16.msra.mxu0 %v157
    %167 = vmatpush.bf16.msra.mxu0 %v156
    %168 = vmatpush.bf16.msra.mxu0 %v155
    %169 = vmatpush.bf16.msra.mxu0 %v154
    %170 = vmatpush.bf16.msra.mxu0 %v153
    %171 = vmatpush.bf16.msra.mxu0 %v152
    %172 = vmatpush.bf16.msra.mxu0 %v151
    %173 = vmatpush.bf16.msra.mxu0 %v150
    %174 = vmatmul.bf16.gmra.mxu0 %v116
    %v175 = vpop.f32.mrf.mxu0
    %v176 = vadd.f32 %v110, %v175
    %v177 = vpop.f32.mrf.mxu0
    %v178 = vadd.f32 %v110, %v177
    %179 = vdwg.mxu0
    %v180 = vpack.c.bf16 %v178, %v176
    %v181 = vld [vmem:[#allocation7] sm:$0xf]
    %v182 = vld [vmem:[#allocation7 + $0x4] sm:$0xf]
    %v183 = vld [vmem:[#allocation7 + $0x8] sm:$0xf]
    %v184 = vld [vmem:[#allocation7 + $0xc] sm:$0xf]
    %v185 = vld [vmem:[#allocation7 + $0x10] sm:$0xf]
    %v186 = vld [vmem:[#allocation7 + $0x14] sm:$0xf]
    %v187 = vld [vmem:[#allocation7 + $0x18] sm:$0xf]
    %v188 = vld [vmem:[#allocation7 + $0x1c] sm:$0xf]
    %v189 = vld [vmem:[#allocation7 + $0x20] sm:$0xf]
    %v190 = vld [vmem:[#allocation7 + $0x24] sm:$0xf]
    %v191 = vld [vmem:[#allocation7 + $0x28] sm:$0xf]
    %v192 = vld [vmem:[#allocation7 + $0x2c] sm:$0xf]
    %v193 = vld [vmem:[#allocation7 + $0x30] sm:$0xf]
    %v194 = vld [vmem:[#allocation7 + $0x34] sm:$0xf]
    %v195 = vld [vmem:[#allocation7 + $0x38] sm:$0xf]
    %v196 = vld [vmem:[#allocation7 + $0x3c] sm:$0xf]
    %v197 = vld [vmem:[%s4] sm:$0x1]
    %v199 = vperm.slane %v197, 0
    %v217 = vunpack.c.l.b16 %v181
    %v218 = vunpack.c.l.b16 %v182
    %v219 = vunpack.c.l.b16 %v183
    %v220 = vunpack.c.l.b16 %v184
    %v221 = vunpack.c.l.b16 %v185
    %v222 = vunpack.c.l.b16 %v186
    %v223 = vunpack.c.l.b16 %v187
    %v224 = vunpack.c.l.b16 %v188
    %v225 = vunpack.c.l.b16 %v189
    %v226 = vunpack.c.l.b16 %v190
    %v227 = vunpack.c.l.b16 %v191
    %v228 = vunpack.c.l.b16 %v192
    %v229 = vunpack.c.l.b16 %v193
    %v230 = vunpack.c.l.b16 %v194
    %v231 = vunpack.c.l.b16 %v195
    %v232 = vunpack.c.l.b16 %v196
    %v233 = vpack.c.b16 %v218, %v217
    %v234 = vpack.c.b16 %v220, %v219
    %v235 = vpack.c.b16 %v222, %v221
    %v236 = vpack.c.b16 %v224, %v223
    %v237 = vpack.c.b16 %v226, %v225
    %v238 = vpack.c.b16 %v228, %v227
    %v239 = vpack.c.b16 %v230, %v229
    %v240 = vpack.c.b16 %v232, %v231
    %249 = vmatpush.bf16.msra.mxu0 %v240
    %250 = vmatpush.bf16.msra.mxu0 %v239
    %251 = vmatpush.bf16.msra.mxu0 %v238
    %252 = vmatpush.bf16.msra.mxu0 %v237
    %253 = vmatpush.bf16.msra.mxu0 %v236
    %254 = vmatpush.bf16.msra.mxu0 %v235
    %255 = vmatpush.bf16.msra.mxu0 %v234
    %256 = vmatpush.bf16.msra.mxu0 %v233
    %257 = vmatmul.bf16.gmra.mxu0 %v180
    %v258 = vpop.f32.mrf.mxu0
    %v259 = vadd.f32 %v199, %v258
    %v260 = vpop.f32.mrf.mxu0
    %v261 = vadd.f32 %v199, %v260
    %262 = vdwg.mxu0
    %v263 = vmax.f32 %v259, 0.0
    %v264 = vmax.f32 %v261, 0.0
    %v265 = vpack.c.bf16 %v264, %v263
    %v266 = vld [vmem:[#allocation8] sm:$0xf]
    %v267 = vld [vmem:[#allocation8 + $0x4] sm:$0xf]
    %v268 = vld [vmem:[#allocation8 + $0x8] sm:$0xf]
    %v269 = vld [vmem:[#allocation8 + $0xc] sm:$0xf]
    %v270 = vld [vmem:[#allocation8 + $0x10] sm:$0xf]
    %v271 = vld [vmem:[#allocation8 + $0x14] sm:$0xf]
    %v272 = vld [vmem:[#allocation8 + $0x18] sm:$0xf]
    %v273 = vld [vmem:[#allocation8 + $0x1c] sm:$0xf]
    %v274 = vld [vmem:[#allocation8 + $0x20] sm:$0xf]
    %v275 = vld [vmem:[#allocation8 + $0x24] sm:$0xf]
    %v276 = vld [vmem:[#allocation8 + $0x28] sm:$0xf]
    %v277 = vld [vmem:[#allocation8 + $0x2c] sm:$0xf]
    %v278 = vld [vmem:[#allocation8 + $0x30] sm:$0xf]
    %v279 = vld [vmem:[#allocation8 + $0x34] sm:$0xf]
    %v280 = vld [vmem:[#allocation8 + $0x38] sm:$0xf]
    %v281 = vld [vmem:[#allocation8 + $0x3c] sm:$0xf]
    %v282 = vld [vmem:[%s6] sm:$0x1]
    %v284 = vperm.slane %v282, 0
    %v302 = vunpack.c.l.b16 %v266
    %v303 = vunpack.c.l.b16 %v267
    %v304 = vunpack.c.l.b16 %v268
    %v305 = vunpack.c.l.b16 %v269
    %v306 = vunpack.c.l.b16 %v270
    %v307 = vunpack.c.l.b16 %v271
    %v308 = vunpack.c.l.b16 %v272
    %v309 = vunpack.c.l.b16 %v273
    %v310 = vunpack.c.l.b16 %v274
    %v311 = vunpack.c.l.b16 %v275
    %v312 = vunpack.c.l.b16 %v276
    %v313 = vunpack.c.l.b16 %v277
    %v314 = vunpack.c.l.b16 %v278
    %v315 = vunpack.c.l.b16 %v279
    %v316 = vunpack.c.l.b16 %v280
    %v317 = vunpack.c.l.b16 %v281
    %v318 = vpack.c.b16 %v303, %v302
    %v319 = vpack.c.b16 %v305, %v304
    %v320 = vpack.c.b16 %v307, %v306
    %v321 = vpack.c.b16 %v309, %v308
    %v322 = vpack.c.b16 %v311, %v310
    %v323 = vpack.c.b16 %v313, %v312
    %v324 = vpack.c.b16 %v315, %v314
    %v325 = vpack.c.b16 %v317, %v316
    %334 = vmatpush.bf16.msra.mxu0 %v325
    %335 = vmatpush.bf16.msra.mxu0 %v324
    %336 = vmatpush.bf16.msra.mxu0 %v323
    %337 = vmatpush.bf16.msra.mxu0 %v322
    %338 = vmatpush.bf16.msra.mxu0 %v321
    %339 = vmatpush.bf16.msra.mxu0 %v320
    %340 = vmatpush.bf16.msra.mxu0 %v319
    %341 = vmatpush.bf16.msra.mxu0 %v318
    %342 = vmatmul.bf16.gmra.mxu0 %v265
    %v343 = vpop.f32.mrf.mxu0
    %v344 = vadd.f32 %v284, %v343
    %v345 = vpop.f32.mrf.mxu0
    %v346 = vadd.f32 %v284, %v345
    %347 = vdwg.mxu0
    %v348 = vmul.f32 %v344, %v344
    %v349 = vmul.f32 %v346, %v346
    %350 = vadd.xlane.f32.xlu0 %v348
    %v351 = vpop.xlane.xlu0 %350
    %352 = vadd.xlane.f32.xlu0 %v349
    %v353 = vpop.xlane.xlu0 %352
    %v354 = vmax.f32 %v351, 1e-24
    %v355 = vmax.f32 %v353, 1e-24
    %v356 = vrsqrt.pop %v354
    %v357 = vmul.f32 %v356, %v354
    %v358 = vmul.f32 %v357, %v356
    %v359 = vmul.f32 0.5, %v358
    %v360 = vsub.f32 1.5, %v359
    %v361 = vmul.f32 %v356, %v360
    %vm362 = vweird.f32 %v354
    %vm363 = vweird.f32 %v356
    %vm364 = vmor %vm362, %vm363
    %v365 = vsel %vm364, %v356, %v361
    %v366 = vrsqrt.pop %v355
    %v367 = vmul.f32 %v366, %v355
    %v368 = vmul.f32 %v367, %v366
    %v369 = vmul.f32 0.5, %v368
    %v370 = vsub.f32 1.5, %v369
    %v371 = vmul.f32 %v366, %v370
    %vm372 = vweird.f32 %v355
    %vm373 = vweird.f32 %v366
    %vm374 = vmor %vm372, %vm373
    %v375 = vsel %vm374, %v366, %v371
    %v376 = vmul.f32 %v344, %v365
    %v377 = vmul.f32 %v346, %v375
    %v378 = vmul.f32 %v376, 5.0
    %379 = vmatpush.xpose.msra.mxu0 0.0
    %380 = vmatpush.xpose.msra.mxu0 0.0
    %381 = vmatpush.xpose.msra.mxu0 0.0
    %382 = vmatpush.xpose.msra.mxu0 0.0
    %383 = vmatpush.xpose.msra.mxu0 0.0
    %384 = vmatpush.xpose.msra.mxu0 0.0
    %385 = vmatpush.xpose.msra.mxu0 0.0
    %386 = vmatpush.xpose.msra.mxu0 0.0
    %387 = vmatpush.xpose.msra.mxu0 0.0
    %388 = vmatpush.xpose.msra.mxu0 0.0
    %389 = vmatpush.xpose.msra.mxu0 0.0
    %390 = vmatpush.xpose.msra.mxu0 0.0
    %391 = vmatpush.xpose.msra.mxu0 0.0
    %392 = vmatpush.xpose.msra.mxu0 0.0
    %393 = vmatpush.xpose.msra.mxu0 0.0
    %394 = vmatpush.xpose.msra.mxu0 %v377
    %395 = vmatmul.f32.gmra.mxu0 %v378
    %v396 = vpop.f32.mrf.mxu0
    %v397 = vadd.f32 0.0, %v396
    %398 = vdwg.mxu0
    %v399 = vmul.f32 %v378, %v377
    %400 = vadd.xlane.f32.xlu0 %v399
    %v401 = vpop.xlane.xlu0 %400
    %v402 = vsub.f32 %v397, 5.0
    %v403 = vmul.f32 %v402, 1.442695
    %v404 = vpow.pop %v403
    %vm405 = vcmask 64512
    %v406 = vsel %vm405, %v404, 0.0
    %407 = vadd.xlane.f32.xlu0 %v406
    %v408 = vpop.xlane.xlu0 %407
    %v409 = vlog2.pop %v408
    %v410 = vmul.f32 %v409, 0.6931472
    %v411 = vadd.f32 %v410, 5.0
    %v412 = vrot.slane %v406, 4
    %v413 = vadd.f32 %v406, %v412
    %v414 = vrot.slane %v413, 2
    %v415 = vadd.f32 %v413, %v414
    %v416 = vrot.slane %v415, 1
    %v417 = vadd.f32 %v415, %v416
    %v418 = vlog2.pop %v417
    %v419 = vmul.f32 %v418, 0.6931472
    %v420 = vadd.f32 %v419, 5.0
    %vm421 = vcmask 7168
    %v422 = vsel %vm421, %v411, 0.0
    %423 = vadd.xlane.f32.xlu0 %v422
    %v424 = vpop.xlane.xlu0 %423
    %v425 = vrot.slane %v424, 4
    %v426 = vadd.f32 %v424, %v425
    %v427 = vrot.slane %v426, 2
    %v428 = vadd.f32 %v426, %v427
    %v429 = vrot.slane %v428, 1
    %v430 = vadd.f32 %v428, %v429
    %s431 = vtos %v430
    %v432 = vrcp.pop 8.0
    %v433 = vmul.f32 8.0, %v432
    %v434 = vsub.f32 1.0, %v433
    %v435 = vmul.f32 %v432, %v434
    %v436 = vadd.f32 %v432, %v435
    %vm437 = vweird.f32 %v432
    %v438 = vsel %vm437, %v432, %v436
    %s439 = vtos %v438
    %s440 = smul.f32 %s431, %s439
    %s441 = smul.f32 %s440, 0.5
    %vm442 = vcmask 57344
    %v443 = vsel %vm442, %v420, 0.0
    %444 = vadd.xlane.f32.xlu0 %v443
    %v445 = vpop.xlane.xlu0 %444
    %v446 = vrot.slane %v445, 4
    %v447 = vadd.f32 %v445, %v446
    %v448 = vrot.slane %v447, 2
    %v449 = vadd.f32 %v447, %v448
    %v450 = vrot.slane %v449, 1
    %v451 = vadd.f32 %v449, %v450
    %s452 = vtos %v451
    %v453 = vrcp.pop 8.0
    %v454 = vmul.f32 8.0, %v453
    %v455 = vsub.f32 1.0, %v454
    %v456 = vmul.f32 %v453, %v455
    %v457 = vadd.f32 %v453, %v456
    %vm458 = vweird.f32 %v453
    %v459 = vsel %vm458, %v453, %v457
    %s460 = vtos %v459
    %s461 = smul.f32 %s452, %s460
    %s462 = smul.f32 %s461, 0.5
    %s463 = sadd.f32 %s441, %s462
    %v464 = vsel %vm421, %v401, 0.0
    %465 = vadd.xlane.f32.xlu0 %v464
    %v466 = vpop.xlane.xlu0 %465
    %v467 = vrot.slane %v466, 4
    %v468 = vadd.f32 %v466, %v467
    %v469 = vrot.slane %v468, 2
    %v470 = vadd.f32 %v468, %v469
    %v471 = vrot.slane %v470, 1
    %v472 = vadd.f32 %v470, %v471
    %s473 = vtos %v472
    %v474 = vrcp.pop 8.0
    %v475 = vmul.f32 8.0, %v474
    %v476 = vsub.f32 1.0, %v475
    %v477 = vmul.f32 %v474, %v476
    %v478 = vadd.f32 %v474, %v477
    %vm479 = vweird.f32 %v474
    %v480 = vsel %vm479, %v474, %v478
    %s481 = vtos %v480
    %s482 = smul.f32 %s473, %s481
    %s483 = ssub.f32 %s463, %s482
    %s484 = scalar_lea.smem [#allocation10], 0
    %485 = sst [smem:[%s484]] %s483
    // Predicated region
    $region46: #{tpu_custom_call.1} parent=1 // pred_check
      _
    $region47: #{tpu_custom_call.1} parent=1 // pred_check_branch
      %487 = sbr.rel (0) target = $region49
    $region48: #{tpu_custom_call.1} parent=1 // pred_region
      %489 = vsyncadd [#allocation4], 0
      %s491 = sshll.u32 %s7, 4
      %s492 = int_to_ptr.hbm [resolvable:$true] %s491
      %494 = dma.smem_to_hbm [#allocation10], 16, %s492, [#allocation4]
    $region49: #{tpu_custom_call.1} parent=1 // pred_fallthru
      _
    // Predicated region
    $region50: #{tpu_custom_call.1} parent=1 // pred_check
      _
    $region51: #{tpu_custom_call.1} parent=1 // pred_check_branch
      %496 = sbr.rel (0) target = $region53
    $region52: #{tpu_custom_call.1} parent=1 // pred_region
      %498 = dma.done [#allocation4], 16
    $region53: #{tpu_custom_call.1} parent=1 // pred_fallthru
      _
    %499 = sfence
    %500 = vsyncpa [#allocation3], 1
    %501 = vsyncpa [#allocation6], 1
    %502 = vsyncpa [#allocation9], 1
    %503 = vsyncpa [#allocation4], 1

</llo_original>
